<compile_context>
chip_gen: v5e
topology: v5e:2x2
jax: 0.10.0
libtpu: 0.0.40
codegen_flags: <defaults>
</compile_context>

<pallas_src>
import functools

import numpy as np
import jax
import jax.numpy as jnp
from jax import lax
from jax.experimental import pallas as pl
from jax.experimental.pallas import tpu as pltpu


def mixture_attention_kernel(x_ref, abs_pe_ref, rel_pe_ref, alpha_ref,
                             wqkv_ref, bqkv_ref, wo_ref, bo_ref, out_ref,
                             *, num_heads):
    """One grid step = one batch element: PE mixing, fused QKV projection,
       per-head attention, fused output projection."""
    S, D = x_ref.shape[1], x_ref.shape[2]
    Dh = D // num_heads
    f32, bf16 = jnp.float32, jnp.bfloat16

    alpha = alpha_ref[0, 0]
    # Mixture positional encoding: alpha * absolute + (1 - alpha) * relative.
    pe = alpha * abs_pe_ref[...] + (1.0 - alpha) * rel_pe_ref[...]
    xp_b = (x_ref[0] + pe).astype(bf16)                        # (S, D) bf16

    # NOTE: reference scales by sqrt(d_model), NOT sqrt(head_dim).
    scale = 1.0 / (D ** 0.5)

    # Fused QKV projection: one (S,D)@(D,3D) MXU pass, bf16 inputs + f32 acc.
    qkv = jnp.dot(xp_b, wqkv_ref[...], preferred_element_type=f32)
    qkv = qkv + bqkv_ref[...]                                   # (S, 3D) f32

    # Per-head attention.  H=4 is small, so a static unrolled loop is fine;
    # TODO(synk): switch to lax.fori_loop(unroll=True) / bound live ranges if
    #             num_heads grows (avoid vreg spills from the unrolled body).
    heads = []
    for h in range(num_heads):
        q_h = (qkv[:, h * Dh:(h + 1) * Dh] * scale).astype(bf16)          # (S, Dh)
        k_h = qkv[:, D + h * Dh: D + (h + 1) * Dh].astype(bf16)           # (S, Dh)
        v_h = qkv[:, 2 * D + h * Dh: 2 * D + (h + 1) * Dh].astype(bf16)   # (S, Dh)

        # QK^T via dot_general contracting last dims — no explicit k transpose.
        s = lax.dot_general(q_h, k_h, (((1,), (1,)), ((), ())),
                            preferred_element_type=f32)        # (S, S) f32

        # Numerically-stable softmax; normalisation deferred past P@V.
        m = jnp.max(s, axis=-1, keepdims=True)
        p = jnp.exp(s - m)
        inv_l = pl.reciprocal(jnp.sum(p, axis=-1, keepdims=True), approx=True)

        o_h = jnp.dot(p.astype(bf16), v_h, preferred_element_type=f32) * inv_l
        heads.append(o_h.astype(bf16))                          # (S, Dh) bf16

    # Fused output projection: one (S,D)@(D,D) MXU pass with K = D = 128.
    ctx = jnp.concatenate(heads, axis=-1)                       # (S, D) bf16
    out = jnp.dot(ctx, wo_ref[...], preferred_element_type=f32) + bo_ref[...]
    out_ref[0] = out.astype(out_ref.dtype)


def mixture_attention(x, abs_pe, rel_pe, alpha, wq, bq, wk, bk, wv, bv, wo, bo,
                      *, num_heads):
    B, S, D = x.shape

    # --- wrapper-side layout plumbing (done once per call, tiny) ---
    # Column-block packing [Q | K | V]; within each block, head h occupies
    # columns h*Dh:(h+1)*Dh (the natural nn.Linear -> view(heads) split).
    wqkv = jnp.concatenate([wq, wk, wv], axis=1).astype(jnp.bfloat16)   # (D, 3D) bf16
    bqkv = jnp.concatenate([bq, bk, bv], axis=1)                        # (1, 3D) f32
    wo_b = wo.astype(jnp.bfloat16)                                      # (D, D) bf16

    kernel = functools.partial(mixture_attention_kernel, num_heads=num_heads)

    full = lambda shape: pl.BlockSpec(shape, lambda b: (0,) * len(shape))

    flops = int(B * (8 * S * D * D + 4 * S * S * D))
    transcendentals = int(B * num_heads * S * S)
    bytes_accessed = int(4 * (2 * B * S * D + 2 * S * D + 4 * D + 1)
                         + 2 * (4 * D * D))

    return pl.pallas_call(
        kernel,
        out_shape=jax.ShapeDtypeStruct((B, S, D), x.dtype),
        grid=(B,),
        in_specs=[
            pl.BlockSpec((1, S, D), lambda b: (b, 0, 0)),          # x
            full((S, D)),                                          # abs_pe
            full((S, D)),                                          # rel_pe
            pl.BlockSpec(memory_space=pltpu.MemorySpace.SMEM),     # alpha (1,1)
            full((D, 3 * D)),                                      # wqkv (bf16)
            full((1, 3 * D)),                                      # bqkv
            full((D, D)),                                          # wo (bf16)
            full((1, D)),                                          # bo
        ],
        out_specs=pl.BlockSpec((1, S, D), lambda b: (b, 0, 0)),
        compiler_params=pltpu.CompilerParams(
            dimension_semantics=("parallel",)),
        cost_estimate=pl.CostEstimate(flops=flops,
                                      transcendentals=transcendentals,
                                      bytes_accessed=bytes_accessed),
    )(x, abs_pe, rel_pe, alpha, wqkv, bqkv, wo_b, bo)


def reference(x, abs_pe, rel_pe, alpha, wq, bq, wk, bk, wv, bv, wo, bo, *, num_heads):
    """Pure-JAX f32 reference matching the PyTorch forward (dropout = identity)."""
    B, S, D = x.shape
    Dh = D // num_heads
    pe = alpha[0, 0] * abs_pe + (1.0 - alpha[0, 0]) * rel_pe
    xp = x + pe[None]
    q = (xp @ wq + bq).reshape(B, S, num_heads, Dh).transpose(0, 2, 1, 3)
    k = (xp @ wk + bk).reshape(B, S, num_heads, Dh).transpose(0, 2, 1, 3)
    v = (xp @ wv + bv).reshape(B, S, num_heads, Dh).transpose(0, 2, 1, 3)
    attn = jax.nn.softmax(q @ jnp.swapaxes(k, -2, -1) / (D ** 0.5), axis=-1)
    out = (attn @ v).transpose(0, 2, 1, 3).reshape(B, S, D)
    return out @ wo + bo


if __name__ == "__main__":
    # Small, tile-friendly shapes: S multiple of 8, D multiple of 128 so the
    # output writeback is lane-dense (unmasked vst).
    B, S, D, H = 2, 16, 128, 4
    MAX_SEQ_LEN = 64
    key = jax.random.PRNGKey(0)
    ks = jax.random.split(key, 10)

    x = jax.random.normal(ks[0], (B, S, D), dtype=jnp.float32)

    # Absolute sinusoidal PE (first S rows of the pe buffer).
    position = jnp.arange(S, dtype=jnp.float32)[:, None]
    div_term = jnp.exp(jnp.arange(0, D, 2, dtype=jnp.float32) * (-np.log(10000.0) / D))
    abs_pe = jnp.zeros((S, D), dtype=jnp.float32)
    abs_pe = abs_pe.at[:, 0::2].set(jnp.sin(position * div_term))
    abs_pe = abs_pe.at[:, 1::2].set(jnp.cos(position * div_term))

    # Learned relative PE table (2*max_seq_len - 1, D); the forward uses
    # relative_pe[:, :S] == table[max_seq_len - S : max_seq_len].
    rel_table = jax.random.normal(ks[1], (2 * MAX_SEQ_LEN - 1, D), dtype=jnp.float32)
    rel_pe = rel_table[MAX_SEQ_LEN - S: MAX_SEQ_LEN]           # (S, D)

    alpha = jnp.full((1, 1), 0.5, dtype=jnp.float32)

    def linear_params(k, fan_in, fan_out):
        kw, kb = jax.random.split(k)
        bound = 1.0 / np.sqrt(fan_in)
        w = jax.random.uniform(kw, (fan_in, fan_out), jnp.float32, -bound, bound)
        b = jax.random.uniform(kb, (1, fan_out), jnp.float32, -bound, bound)
        return w, b

    wq, bq = linear_params(ks[2], D, D)
    wk, bk = linear_params(ks[3], D, D)
    wv, bv = linear_params(ks[4], D, D)
    wo, bo = linear_params(ks[5], D, D)

    out = mixture_attention(x, abs_pe, rel_pe, alpha,
                            wq, bq, wk, bk, wv, bv, wo, bo, num_heads=H)
    out = jax.block_until_ready(out)

    ref = reference(x, abs_pe, rel_pe, alpha,
                    wq, bq, wk, bk, wv, bv, wo, bo, num_heads=H)
    ref = jax.block_until_ready(ref)

    np.testing.assert_allclose(np.asarray(out), np.asarray(ref),
                               rtol=2e-2, atol=2e-2)
    print("KERNEL_OK")
</pallas_src>

<mosaic_0001>
module attributes {stable_mosaic.version = 11 : i64} {
  func.func @mixture_attention_kernel(%arg0: i32, %arg1: memref<1x16x128xf32, #tpu.memory_space<vmem>>, %arg2: memref<16x128xf32, #tpu.memory_space<vmem>>, %arg3: memref<16x128xf32, #tpu.memory_space<vmem>>, %arg4: memref<1x1xf32, #tpu.memory_space<smem>>, %arg5: memref<128x384xbf16, #tpu.memory_space<vmem>>, %arg6: memref<1x384xf32, #tpu.memory_space<vmem>>, %arg7: memref<128x128xbf16, #tpu.memory_space<vmem>>, %arg8: memref<1x128xf32, #tpu.memory_space<vmem>>, %arg9: memref<1x16x128xf32, #tpu.memory_space<vmem>>) attributes {dimension_semantics = [#tpu.dimension_semantics<parallel>], iteration_bounds = array<i64: 2>, scalar_prefetch = 0 : i64, scratch_operands = 0 : i64, tpu.core_type = #tpu.core_type<tc>, window_params = [{transform_indices = @transform_0, window_bounds = array<i64: 1, 16, 128>}, {pipeline_mode = #tpu.pipeline_mode<synchronous>, transform_indices = @transform_1, window_bounds = array<i64: 16, 128>}, {pipeline_mode = #tpu.pipeline_mode<synchronous>, transform_indices = @transform_2, window_bounds = array<i64: 16, 128>}, {transform_indices = @transform_3, window_bounds = array<i64: 1, 1>}, {pipeline_mode = #tpu.pipeline_mode<synchronous>, transform_indices = @transform_4, window_bounds = array<i64: 128, 384>}, {pipeline_mode = #tpu.pipeline_mode<synchronous>, transform_indices = @transform_5, window_bounds = array<i64: 1, 384>}, {pipeline_mode = #tpu.pipeline_mode<synchronous>, transform_indices = @transform_6, window_bounds = array<i64: 128, 128>}, {pipeline_mode = #tpu.pipeline_mode<synchronous>, transform_indices = @transform_7, window_bounds = array<i64: 1, 128>}, {transform_indices = @transform_8, window_bounds = array<i64: 1, 16, 128>}]} {
    %c0 = arith.constant 0 : index
    %c0_0 = arith.constant 0 : index
    %0 = memref.load %arg4[%c0, %c0_0] : memref<1x1xf32, #tpu.memory_space<smem>>
    %c0_1 = arith.constant 0 : index
    %c0_2 = arith.constant 0 : index
    %1 = vector.load %arg2[%c0_1, %c0_2] : memref<16x128xf32, #tpu.memory_space<vmem>>, vector<16x128xf32>
    %2 = vector.broadcast %0 : f32 to vector<16x128xf32>
    %3 = arith.mulf %2, %1 : vector<16x128xf32>
    %cst = arith.constant 1.000000e+00 : f32
    %4 = arith.subf %cst, %0 : f32
    %c0_3 = arith.constant 0 : index
    %c0_4 = arith.constant 0 : index
    %5 = vector.load %arg3[%c0_3, %c0_4] : memref<16x128xf32, #tpu.memory_space<vmem>>, vector<16x128xf32>
    %6 = vector.broadcast %4 : f32 to vector<16x128xf32>
    %7 = arith.mulf %6, %5 : vector<16x128xf32>
    %8 = arith.addf %3, %7 : vector<16x128xf32>
    %c0_5 = arith.constant 0 : index
    %c0_6 = arith.constant 0 : index
    %c0_7 = arith.constant 0 : index
    %9 = vector.load %arg1[%c0_5, %c0_6, %c0_7] : memref<1x16x128xf32, #tpu.memory_space<vmem>>, vector<1x16x128xf32>
    %10 = vector.shape_cast %9 : vector<1x16x128xf32> to vector<16x128xf32>
    %11 = arith.addf %10, %8 : vector<16x128xf32>
    %12 = arith.truncf %11 : vector<16x128xf32> to vector<16x128xbf16>
    %c0_8 = arith.constant 0 : index
    %c0_9 = arith.constant 0 : index
    %13 = vector.load %arg5[%c0_8, %c0_9] : memref<128x384xbf16, #tpu.memory_space<vmem>>, vector<128x384xbf16>
    %cst_10 = arith.constant dense<0.000000e+00> : vector<16x384xf32>
    %14 = tpu.matmul %12, %13, %cst_10 {dimension_numbers = #tpu.dot_dimension_numbers<[1], [0], [0], [1], [0, 0, 1, 1], [], []>} : vector<16x128xbf16>, vector<128x384xbf16>, vector<16x384xf32> -> vector<16x384xf32>
    %c0_11 = arith.constant 0 : index
    %c0_12 = arith.constant 0 : index
    %15 = vector.load %arg6[%c0_11, %c0_12] : memref<1x384xf32, #tpu.memory_space<vmem>>, vector<1x384xf32>
    %16 = vector.broadcast %15 : vector<1x384xf32> to vector<16x384xf32>
    %17 = arith.addf %14, %16 : vector<16x384xf32>
    %18 = vector.extract_strided_slice %17 {offsets = [0, 0], sizes = [16, 32], strides = [1, 1]} : vector<16x384xf32> to vector<16x32xf32>
    %cst_13 = arith.constant 0.0883883461 : f32
    %19 = vector.broadcast %cst_13 : f32 to vector<16x32xf32>
    %20 = arith.mulf %18, %19 : vector<16x32xf32>
    %21 = arith.truncf %20 : vector<16x32xf32> to vector<16x32xbf16>
    %22 = vector.extract_strided_slice %17 {offsets = [0, 128], sizes = [16, 32], strides = [1, 1]} : vector<16x384xf32> to vector<16x32xf32>
    %23 = arith.truncf %22 : vector<16x32xf32> to vector<16x32xbf16>
    %24 = vector.extract_strided_slice %17 {offsets = [0, 256], sizes = [16, 32], strides = [1, 1]} : vector<16x384xf32> to vector<16x32xf32>
    %25 = arith.truncf %24 : vector<16x32xf32> to vector<16x32xbf16>
    %cst_14 = arith.constant dense<0.000000e+00> : vector<16x16xf32>
    %26 = tpu.matmul %21, %23, %cst_14 {dimension_numbers = #tpu.dot_dimension_numbers<[1], [1], [0], [0], [0, 0, 1, 0], [], []>} : vector<16x32xbf16>, vector<16x32xbf16>, vector<16x16xf32> -> vector<16x16xf32>
    %cst_15 = arith.constant dense<0xFF800000> : vector<16xf32>
    %27 = vector.multi_reduction <maximumf>, %26, %cst_15 [1] : vector<16x16xf32> to vector<16xf32>
    %28 = vector.shape_cast %27 : vector<16xf32> to vector<16x1xf32>
    %29 = vector.broadcast %28 : vector<16x1xf32> to vector<16x16xf32>
    %30 = arith.subf %26, %29 : vector<16x16xf32>
    %31 = math.exp %30 : vector<16x16xf32>
    %cst_16 = arith.constant dense<0.000000e+00> : vector<16xf32>
    %32 = vector.multi_reduction <add>, %31, %cst_16 [1] : vector<16x16xf32> to vector<16xf32>
    %33 = vector.shape_cast %32 : vector<16xf32> to vector<16x1xf32>
    %34 = tpu.reciprocal %33 {approx = true} : vector<16x1xf32> -> vector<16x1xf32>
    %35 = arith.truncf %31 : vector<16x16xf32> to vector<16x16xbf16>
    %cst_17 = arith.constant dense<0.000000e+00> : vector<16x32xf32>
    %36 = tpu.matmul %35, %25, %cst_17 {dimension_numbers = #tpu.dot_dimension_numbers<[1], [0], [0], [1], [0, 0, 1, 1], [], []>} : vector<16x16xbf16>, vector<16x32xbf16>, vector<16x32xf32> -> vector<16x32xf32>
    %37 = vector.broadcast %34 : vector<16x1xf32> to vector<16x32xf32>
    %38 = arith.mulf %36, %37 : vector<16x32xf32>
    %39 = arith.truncf %38 : vector<16x32xf32> to vector<16x32xbf16>
    %40 = vector.extract_strided_slice %17 {offsets = [0, 32], sizes = [16, 32], strides = [1, 1]} : vector<16x384xf32> to vector<16x32xf32>
    %cst_18 = arith.constant 0.0883883461 : f32
    %41 = vector.broadcast %cst_18 : f32 to vector<16x32xf32>
    %42 = arith.mulf %40, %41 : vector<16x32xf32>
    %43 = arith.truncf %42 : vector<16x32xf32> to vector<16x32xbf16>
    %44 = vector.extract_strided_slice %17 {offsets = [0, 160], sizes = [16, 32], strides = [1, 1]} : vector<16x384xf32> to vector<16x32xf32>
    %45 = arith.truncf %44 : vector<16x32xf32> to vector<16x32xbf16>
    %46 = vector.extract_strided_slice %17 {offsets = [0, 288], sizes = [16, 32], strides = [1, 1]} : vector<16x384xf32> to vector<16x32xf32>
    %47 = arith.truncf %46 : vector<16x32xf32> to vector<16x32xbf16>
    %cst_19 = arith.constant dense<0.000000e+00> : vector<16x16xf32>
    %48 = tpu.matmul %43, %45, %cst_19 {dimension_numbers = #tpu.dot_dimension_numbers<[1], [1], [0], [0], [0, 0, 1, 0], [], []>} : vector<16x32xbf16>, vector<16x32xbf16>, vector<16x16xf32> -> vector<16x16xf32>
    %cst_20 = arith.constant dense<0xFF800000> : vector<16xf32>
    %49 = vector.multi_reduction <maximumf>, %48, %cst_20 [1] : vector<16x16xf32> to vector<16xf32>
    %50 = vector.shape_cast %49 : vector<16xf32> to vector<16x1xf32>
    %51 = vector.broadcast %50 : vector<16x1xf32> to vector<16x16xf32>
    %52 = arith.subf %48, %51 : vector<16x16xf32>
    %53 = math.exp %52 : vector<16x16xf32>
    %cst_21 = arith.constant dense<0.000000e+00> : vector<16xf32>
    %54 = vector.multi_reduction <add>, %53, %cst_21 [1] : vector<16x16xf32> to vector<16xf32>
    %55 = vector.shape_cast %54 : vector<16xf32> to vector<16x1xf32>
    %56 = tpu.reciprocal %55 {approx = true} : vector<16x1xf32> -> vector<16x1xf32>
    %57 = arith.truncf %53 : vector<16x16xf32> to vector<16x16xbf16>
    %cst_22 = arith.constant dense<0.000000e+00> : vector<16x32xf32>
    %58 = tpu.matmul %57, %47, %cst_22 {dimension_numbers = #tpu.dot_dimension_numbers<[1], [0], [0], [1], [0, 0, 1, 1], [], []>} : vector<16x16xbf16>, vector<16x32xbf16>, vector<16x32xf32> -> vector<16x32xf32>
    %59 = vector.broadcast %56 : vector<16x1xf32> to vector<16x32xf32>
    %60 = arith.mulf %58, %59 : vector<16x32xf32>
    %61 = arith.truncf %60 : vector<16x32xf32> to vector<16x32xbf16>
    %62 = vector.extract_strided_slice %17 {offsets = [0, 64], sizes = [16, 32], strides = [1, 1]} : vector<16x384xf32> to vector<16x32xf32>
    %cst_23 = arith.constant 0.0883883461 : f32
    %63 = vector.broadcast %cst_23 : f32 to vector<16x32xf32>
    %64 = arith.mulf %62, %63 : vector<16x32xf32>
    %65 = arith.truncf %64 : vector<16x32xf32> to vector<16x32xbf16>
    %66 = vector.extract_strided_slice %17 {offsets = [0, 192], sizes = [16, 32], strides = [1, 1]} : vector<16x384xf32> to vector<16x32xf32>
    %67 = arith.truncf %66 : vector<16x32xf32> to vector<16x32xbf16>
    %68 = vector.extract_strided_slice %17 {offsets = [0, 320], sizes = [16, 32], strides = [1, 1]} : vector<16x384xf32> to vector<16x32xf32>
    %69 = arith.truncf %68 : vector<16x32xf32> to vector<16x32xbf16>
    %cst_24 = arith.constant dense<0.000000e+00> : vector<16x16xf32>
    %70 = tpu.matmul %65, %67, %cst_24 {dimension_numbers = #tpu.dot_dimension_numbers<[1], [1], [0], [0], [0, 0, 1, 0], [], []>} : vector<16x32xbf16>, vector<16x32xbf16>, vector<16x16xf32> -> vector<16x16xf32>
    %cst_25 = arith.constant dense<0xFF800000> : vector<16xf32>
    %71 = vector.multi_reduction <maximumf>, %70, %cst_25 [1] : vector<16x16xf32> to vector<16xf32>
    %72 = vector.shape_cast %71 : vector<16xf32> to vector<16x1xf32>
    %73 = vector.broadcast %72 : vector<16x1xf32> to vector<16x16xf32>
    %74 = arith.subf %70, %73 : vector<16x16xf32>
    %75 = math.exp %74 : vector<16x16xf32>
    %cst_26 = arith.constant dense<0.000000e+00> : vector<16xf32>
    %76 = vector.multi_reduction <add>, %75, %cst_26 [1] : vector<16x16xf32> to vector<16xf32>
    %77 = vector.shape_cast %76 : vector<16xf32> to vector<16x1xf32>
    %78 = tpu.reciprocal %77 {approx = true} : vector<16x1xf32> -> vector<16x1xf32>
    %79 = arith.truncf %75 : vector<16x16xf32> to vector<16x16xbf16>
    %cst_27 = arith.constant dense<0.000000e+00> : vector<16x32xf32>
    %80 = tpu.matmul %79, %69, %cst_27 {dimension_numbers = #tpu.dot_dimension_numbers<[1], [0], [0], [1], [0, 0, 1, 1], [], []>} : vector<16x16xbf16>, vector<16x32xbf16>, vector<16x32xf32> -> vector<16x32xf32>
    %81 = vector.broadcast %78 : vector<16x1xf32> to vector<16x32xf32>
    %82 = arith.mulf %80, %81 : vector<16x32xf32>
    %83 = arith.truncf %82 : vector<16x32xf32> to vector<16x32xbf16>
    %84 = vector.extract_strided_slice %17 {offsets = [0, 96], sizes = [16, 32], strides = [1, 1]} : vector<16x384xf32> to vector<16x32xf32>
    %cst_28 = arith.constant 0.0883883461 : f32
    %85 = vector.broadcast %cst_28 : f32 to vector<16x32xf32>
    %86 = arith.mulf %84, %85 : vector<16x32xf32>
    %87 = arith.truncf %86 : vector<16x32xf32> to vector<16x32xbf16>
    %88 = vector.extract_strided_slice %17 {offsets = [0, 224], sizes = [16, 32], strides = [1, 1]} : vector<16x384xf32> to vector<16x32xf32>
    %89 = arith.truncf %88 : vector<16x32xf32> to vector<16x32xbf16>
    %90 = vector.extract_strided_slice %17 {offsets = [0, 352], sizes = [16, 32], strides = [1, 1]} : vector<16x384xf32> to vector<16x32xf32>
    %91 = arith.truncf %90 : vector<16x32xf32> to vector<16x32xbf16>
    %cst_29 = arith.constant dense<0.000000e+00> : vector<16x16xf32>
    %92 = tpu.matmul %87, %89, %cst_29 {dimension_numbers = #tpu.dot_dimension_numbers<[1], [1], [0], [0], [0, 0, 1, 0], [], []>} : vector<16x32xbf16>, vector<16x32xbf16>, vector<16x16xf32> -> vector<16x16xf32>
    %cst_30 = arith.constant dense<0xFF800000> : vector<16xf32>
    %93 = vector.multi_reduction <maximumf>, %92, %cst_30 [1] : vector<16x16xf32> to vector<16xf32>
    %94 = vector.shape_cast %93 : vector<16xf32> to vector<16x1xf32>
    %95 = vector.broadcast %94 : vector<16x1xf32> to vector<16x16xf32>
    %96 = arith.subf %92, %95 : vector<16x16xf32>
    %97 = math.exp %96 : vector<16x16xf32>
    %cst_31 = arith.constant dense<0.000000e+00> : vector<16xf32>
    %98 = vector.multi_reduction <add>, %97, %cst_31 [1] : vector<16x16xf32> to vector<16xf32>
    %99 = vector.shape_cast %98 : vector<16xf32> to vector<16x1xf32>
    %100 = tpu.reciprocal %99 {approx = true} : vector<16x1xf32> -> vector<16x1xf32>
    %101 = arith.truncf %97 : vector<16x16xf32> to vector<16x16xbf16>
    %cst_32 = arith.constant dense<0.000000e+00> : vector<16x32xf32>
    %102 = tpu.matmul %101, %91, %cst_32 {dimension_numbers = #tpu.dot_dimension_numbers<[1], [0], [0], [1], [0, 0, 1, 1], [], []>} : vector<16x16xbf16>, vector<16x32xbf16>, vector<16x32xf32> -> vector<16x32xf32>
    %103 = vector.broadcast %100 : vector<16x1xf32> to vector<16x32xf32>
    %104 = arith.mulf %102, %103 : vector<16x32xf32>
    %105 = arith.truncf %104 : vector<16x32xf32> to vector<16x32xbf16>
    %106 = tpu.concatenate %39, %61, %83, %105 in 1 : vector<16x32xbf16>, vector<16x32xbf16>, vector<16x32xbf16>, vector<16x32xbf16> -> vector<16x128xbf16>
    %c0_33 = arith.constant 0 : index
    %c0_34 = arith.constant 0 : index
    %107 = vector.load %arg7[%c0_33, %c0_34] : memref<128x128xbf16, #tpu.memory_space<vmem>>, vector<128x128xbf16>
    %cst_35 = arith.constant dense<0.000000e+00> : vector<16x128xf32>
    %108 = tpu.matmul %106, %107, %cst_35 {dimension_numbers = #tpu.dot_dimension_numbers<[1], [0], [0], [1], [0, 0, 1, 1], [], []>} : vector<16x128xbf16>, vector<128x128xbf16>, vector<16x128xf32> -> vector<16x128xf32>
    %c0_36 = arith.constant 0 : index
    %c0_37 = arith.constant 0 : index
    %109 = vector.load %arg8[%c0_36, %c0_37] : memref<1x128xf32, #tpu.memory_space<vmem>>, vector<1x128xf32>
    %110 = vector.broadcast %109 : vector<1x128xf32> to vector<16x128xf32>
    %111 = arith.addf %108, %110 : vector<16x128xf32>
    %c0_38 = arith.constant 0 : index
    %c0_39 = arith.constant 0 : index
    %c0_40 = arith.constant 0 : index
    %112 = vector.load %arg9[%c0_38, %c0_39, %c0_40] : memref<1x16x128xf32, #tpu.memory_space<vmem>>, vector<1x16x128xf32>
    %113 = vector.shape_cast %112 : vector<1x16x128xf32> to vector<16x128xf32>
    %114 = vector.shape_cast %111 : vector<16x128xf32> to vector<1x16x128xf32>
    tpu.vector_store %arg9[%c0_38, %c0_39, %c0_40], %114 {strides = array<i32>} : memref<1x16x128xf32, #tpu.memory_space<vmem>>, vector<1x16x128xf32>,
    return
  }
  func.func @transform_0(%arg0: i32) -> (i32, i32, i32) {
    %c0_i32 = arith.constant 0 : i32
    %c0_i32_0 = arith.constant 0 : i32
    %c0_i32_1 = arith.constant 0 : i32
    return %arg0, %c0_i32, %c0_i32_0 : i32, i32, i32
  }
  func.func @transform_1(%arg0: i32) -> (i32, i32) {
    %c0_i32 = arith.constant 0 : i32
    %c0_i32_0 = arith.constant 0 : i32
    %c0_i32_1 = arith.constant 0 : i32
    return %c0_i32, %c0_i32_0 : i32, i32
  }
  func.func @transform_2(%arg0: i32) -> (i32, i32) {
    %c0_i32 = arith.constant 0 : i32
    %c0_i32_0 = arith.constant 0 : i32
    %c0_i32_1 = arith.constant 0 : i32
    return %c0_i32, %c0_i32_0 : i32, i32
  }
  func.func @transform_3(%arg0: i32) -> (i32, i32) {
    %c0_i32 = arith.constant 0 : i32
    %c0_i32_0 = arith.constant 0 : i32
    %c0_i32_1 = arith.constant 0 : i32
    return %c0_i32, %c0_i32_0 : i32, i32
  }
  func.func @transform_4(%arg0: i32) -> (i32, i32) {
    %c0_i32 = arith.constant 0 : i32
    %c0_i32_0 = arith.constant 0 : i32
    %c0_i32_1 = arith.constant 0 : i32
    return %c0_i32, %c0_i32_0 : i32, i32
  }
  func.func @transform_5(%arg0: i32) -> (i32, i32) {
    %c0_i32 = arith.constant 0 : i32
    %c0_i32_0 = arith.constant 0 : i32
    %c0_i32_1 = arith.constant 0 : i32
    return %c0_i32, %c0_i32_0 : i32, i32
  }
  func.func @transform_6(%arg0: i32) -> (i32, i32) {
    %c0_i32 = arith.constant 0 : i32
    %c0_i32_0 = arith.constant 0 : i32
    %c0_i32_1 = arith.constant 0 : i32
    return %c0_i32, %c0_i32_0 : i32, i32
  }
  func.func @transform_7(%arg0: i32) -> (i32, i32) {
    %c0_i32 = arith.constant 0 : i32
    %c0_i32_0 = arith.constant 0 : i32
    %c0_i32_1 = arith.constant 0 : i32
    return %c0_i32, %c0_i32_0 : i32, i32
  }
  func.func @transform_8(%arg0: i32) -> (i32, i32, i32) {
    %c0_i32 = arith.constant 0 : i32
    %c0_i32_0 = arith.constant 0 : i32
    %c0_i32_1 = arith.constant 0 : i32
    return %arg0, %c0_i32, %c0_i32_0 : i32, i32, i32
  }
}

</mosaic_0001>

<llo_original>
// kernel: tpu_custom_call.1
$region0: #{tpu_custom_call.1}
  #allocation0 [shape = 'u32[]', space=smem, size = 0x4, offset = 0x4, fixed_abs, tag = 'smem constant byte address 0x4 - core index']
  #allocation1 [shape = 'u32[72,128]{1,0:T(1,128)}', space=vmem, size = 0x9000, scoped, tag = 'internal scratch']
  #allocation2 [shape = 'f32[1,1]{1,0:T(1,128)S(6)}', space=smem, size = 0x200, scoped, tag = 'scoped memory for tpu_custom_call.1']
  %s0 = inlined_call_operand.hbm [shape: f32[2,16,128], index: 0, kind: input, shape index: {}]
  %s1 = inlined_call_operand.hbm [shape: f32[16,128], index: 1, kind: input, shape index: {}]
  %s2 = inlined_call_operand.hbm [shape: f32[16,128], index: 2, kind: input, shape index: {}]
  %s3 = inlined_call_operand.<no memory space> [shape: f32[1,1], index: 3, kind: input, shape index: {}]
  %s4 = inlined_call_operand.hbm [shape: bf16[128,384], index: 4, kind: input, shape index: {}]
  %s5 = inlined_call_operand.vmem [shape: f32[1,384], index: 5, kind: input, shape index: {}]
  %s6 = inlined_call_operand.hbm [shape: bf16[128,128], index: 6, kind: input, shape index: {}]
  %s7 = inlined_call_operand.vmem [shape: f32[1,128], index: 7, kind: input, shape index: {}]
  %s8 = inlined_call_operand.hbm [shape: f32[2,16,128], index: 8, kind: output, shape index: {}]
  %s9 = sld [smem:[#allocation0]]
  $region85: #{tpu_custom_call.1} parent=0
    _
  %s11 = ssub.s32 1, %s9
  %s12 = scalar_select 0, %s11, %s9
  %13 = sst [smem:[#allocation2]] %s3
  $region1: #{tpu_custom_call.1} parent=0
    #allocation3 [shape = 'u8[16384]{0}', space=vmem, size = 0x4000, scoped, tag = 'input window, operand 0']
    #allocation4 [shape = 's32[2]{0}', space=sflag, size = 0x8, scoped, tag = 'scoped memory for tpu_custom_call.1']
    #allocation5 [shape = 's32[2]{0}', space=sflag, size = 0x8, scoped, tag = 'scoped memory for tpu_custom_call.1']
    #allocation6 [shape = 'u8[8192]{0}', space=vmem, size = 0x2000, scoped, tag = 'input window, operand 1, single buffered']
    #allocation7 [shape = 's32[1]{0}', space=sflag, size = 0x4, scoped, tag = 'scoped memory for tpu_custom_call.1']
    #allocation8 [shape = 'u8[8192]{0}', space=vmem, size = 0x2000, scoped, tag = 'input window, operand 2, single buffered']
    #allocation9 [shape = 'u8[98304]{0}', space=vmem, size = 0x18000, scoped, tag = 'input window, operand 4, single buffered']
    #allocation10 [shape = 's32[1]{0}', space=sflag, size = 0x4, scoped, tag = 'scoped memory for tpu_custom_call.1']
    #allocation11 [shape = 'u8[32768]{0}', space=vmem, size = 0x8000, scoped, tag = 'input window, operand 6, single buffered']
    #allocation12 [shape = 'u8[16384]{0}', space=vmem, size = 0x4000, scoped, tag = 'output window, operand 0']
    %14 = vsyncpa [#allocation4], 0
    %s15 = scalar_lea.sflag [#allocation4], 1
    %16 = vsyncpa %s15, 0
    %17 = vsyncpa [#allocation7], 0
    %18 = vsyncpa [#allocation10], 0
    %19 = vsyncpa [#allocation5], 0
    %s20 = scalar_lea.sflag [#allocation5], 1
    %21 = vsyncpa %s20, 0
    loop: start=0, step=1, limit=4
    $region2: #{tpu_custom_call.1} parent=1 // loop_pre_header
      _
    $region3: #{tpu_custom_call.1} parent=1 // loop_header
      %s23 = sphi 0, %s27
      %p24 = scmp.ge.s32.totalorder %s23, 4
      %s33 = sphi 0, %s35
      %s36 = sphi 0, %s33
      %s37 = sphi 0, %s36
      %s53 = sphi 0, %s37
      %s57 = sphi 0, %s57
      %s59 = sphi 0, %s57
      %s60 = sphi 0, %s59
      %s74 = sphi 0, %s60
      %s78 = sphi 0, %s78
      %s80 = sphi 0, %s78
      %s81 = sphi 0, %s80
      %s95 = sphi 0, %s81
      %s99 = sphi 0, %s99
      %s101 = sphi 0, %s99
      %s102 = sphi 0, %s101
      %s116 = sphi 0, %s102
      %s120 = sphi 0, %s120
      %s122 = sphi 0, %s120
      %s123 = sphi 0, %s122
      %s137 = sphi 0, %s123
      %s141 = sphi 0, %s141
      %s143 = sphi 0, %s141
      %s144 = sphi 0, %s143
      %s158 = sphi 0, %s144
      %s162 = sphi 0, %s162
      %s164 = sphi 0, %s162
      %s165 = sphi 0, %s164
      %s179 = sphi 0, %s165
      %s183 = sphi 0, %s183
      %s185 = sphi 0, %s183
      %s186 = sphi 0, %s185
      %s200 = sphi 0, %s186
      %s206 = sphi 0, %s208
      %s209 = sphi 0, %s206
      %s210 = sphi 0, %s209
      %s226 = sphi 0, %s210
    $region4: #{tpu_custom_call.1} parent=1 // loop_header_branch
      %26 = sbr.rel (%p24) target = $region8
    $region5: #{tpu_custom_call.1} parent=1 // loop_body
      %s28 = ssub.s32 %s23, 1
      %s29 = ssub.s32 %s23, 2
      %s30 = sadd.s32 %s23, 1
      %s31 = ssub.s32 %s23, %s30
      %p32 = scmp.eq.s32.totalorder %s31, 0
      %s34 = sadd.s32 %s33, 1
      %s35 = scalar_select %p32, %s33, %s34
      %p38 = pneg %p32
      %p39 = scmp.eq.s32.totalorder %s23, 1
      %p40 = por %p38, %p39
      %p41 = scmp.ne.s32.totalorder %s33, %s36
      %p42 = scmp.eq.s32.totalorder %s23, 0
      %p43 = por %p41, %p42
      %p44 = scmp.ne.s32.totalorder %s33, %s36
      %p45 = scmp.eq.s32.totalorder %s28, 1
      %p46 = por %p44, %p45
      %p47 = scmp.ne.s32.totalorder %s36, %s37
      %p48 = scmp.eq.s32.totalorder %s28, 0
      %p49 = por %p47, %p48
      %p50 = scmp.ne.s32.totalorder %s36, %s37
      %p51 = scmp.eq.s32.totalorder %s29, 1
      %p52 = por %p50, %p51
      %p54 = scmp.ne.s32.totalorder %s37, %s53
      %p55 = scmp.eq.s32.totalorder %s29, 0
      %p56 = por %p54, %p55
      %s58 = sadd.s32 %s57, 1
      %p61 = scmp.eq.s32.totalorder %s23, 1
      %p62 = scmp.ne.s32.totalorder %s57, %s59
      %p63 = scmp.eq.s32.totalorder %s23, 0
      %p64 = por %p62, %p63
      %p65 = scmp.ne.s32.totalorder %s57, %s59
      %p66 = scmp.eq.s32.totalorder %s28, 1
      %p67 = por %p65, %p66
      %p68 = scmp.ne.s32.totalorder %s59, %s60
      %p69 = scmp.eq.s32.totalorder %s28, 0
      %p70 = por %p68, %p69
      %p71 = scmp.ne.s32.totalorder %s59, %s60
      %p72 = scmp.eq.s32.totalorder %s29, 1
      %p73 = por %p71, %p72
      %p75 = scmp.ne.s32.totalorder %s60, %s74
      %p76 = scmp.eq.s32.totalorder %s29, 0
      %p77 = por %p75, %p76
      %s79 = sadd.s32 %s78, 1
      %p82 = scmp.eq.s32.totalorder %s23, 1
      %p83 = scmp.ne.s32.totalorder %s78, %s80
      %p84 = scmp.eq.s32.totalorder %s23, 0
      %p85 = por %p83, %p84
      %p86 = scmp.ne.s32.totalorder %s78, %s80
      %p87 = scmp.eq.s32.totalorder %s28, 1
      %p88 = por %p86, %p87
      %p89 = scmp.ne.s32.totalorder %s80, %s81
      %p90 = scmp.eq.s32.totalorder %s28, 0
      %p91 = por %p89, %p90
      %p92 = scmp.ne.s32.totalorder %s80, %s81
      %p93 = scmp.eq.s32.totalorder %s29, 1
      %p94 = por %p92, %p93
      %p96 = scmp.ne.s32.totalorder %s81, %s95
      %p97 = scmp.eq.s32.totalorder %s29, 0
      %p98 = por %p96, %p97
      %s100 = sadd.s32 %s99, 1
      %p103 = scmp.eq.s32.totalorder %s23, 1
      %p104 = scmp.ne.s32.totalorder %s99, %s101
      %p105 = scmp.eq.s32.totalorder %s23, 0
      %p106 = por %p104, %p105
      %p107 = scmp.ne.s32.totalorder %s99, %s101
      %p108 = scmp.eq.s32.totalorder %s28, 1
      %p109 = por %p107, %p108
      %p110 = scmp.ne.s32.totalorder %s101, %s102
      %p111 = scmp.eq.s32.totalorder %s28, 0
      %p112 = por %p110, %p111
      %p113 = scmp.ne.s32.totalorder %s101, %s102
      %p114 = scmp.eq.s32.totalorder %s29, 1
      %p115 = por %p113, %p114
      %p117 = scmp.ne.s32.totalorder %s102, %s116
      %p118 = scmp.eq.s32.totalorder %s29, 0
      %p119 = por %p117, %p118
      %s121 = sadd.s32 %s120, 1
      %p124 = scmp.eq.s32.totalorder %s23, 1
      %p125 = scmp.ne.s32.totalorder %s120, %s122
      %p126 = scmp.eq.s32.totalorder %s23, 0
      %p127 = por %p125, %p126
      %p128 = scmp.ne.s32.totalorder %s120, %s122
      %p129 = scmp.eq.s32.totalorder %s28, 1
      %p130 = por %p128, %p129
      %p131 = scmp.ne.s32.totalorder %s122, %s123
      %p132 = scmp.eq.s32.totalorder %s28, 0
      %p133 = por %p131, %p132
      %p134 = scmp.ne.s32.totalorder %s122, %s123
      %p135 = scmp.eq.s32.totalorder %s29, 1
      %p136 = por %p134, %p135
      %p138 = scmp.ne.s32.totalorder %s123, %s137
      %p139 = scmp.eq.s32.totalorder %s29, 0
      %p140 = por %p138, %p139
      %s142 = sadd.s32 %s141, 1
      %p145 = scmp.eq.s32.totalorder %s23, 1
      %p146 = scmp.ne.s32.totalorder %s141, %s143
      %p147 = scmp.eq.s32.totalorder %s23, 0
      %p148 = por %p146, %p147
      %p149 = scmp.ne.s32.totalorder %s141, %s143
      %p150 = scmp.eq.s32.totalorder %s28, 1
      %p151 = por %p149, %p150
      %p152 = scmp.ne.s32.totalorder %s143, %s144
      %p153 = scmp.eq.s32.totalorder %s28, 0
      %p154 = por %p152, %p153
      %p155 = scmp.ne.s32.totalorder %s143, %s144
      %p156 = scmp.eq.s32.totalorder %s29, 1
      %p157 = por %p155, %p156
      %p159 = scmp.ne.s32.totalorder %s144, %s158
      %p160 = scmp.eq.s32.totalorder %s29, 0
      %p161 = por %p159, %p160
      %s163 = sadd.s32 %s162, 1
      %p166 = scmp.eq.s32.totalorder %s23, 1
      %p167 = scmp.ne.s32.totalorder %s162, %s164
      %p168 = scmp.eq.s32.totalorder %s23, 0
      %p169 = por %p167, %p168
      %p170 = scmp.ne.s32.totalorder %s162, %s164
      %p171 = scmp.eq.s32.totalorder %s28, 1
      %p172 = por %p170, %p171
      %p173 = scmp.ne.s32.totalorder %s164, %s165
      %p174 = scmp.eq.s32.totalorder %s28, 0
      %p175 = por %p173, %p174
      %p176 = scmp.ne.s32.totalorder %s164, %s165
      %p177 = scmp.eq.s32.totalorder %s29, 1
      %p178 = por %p176, %p177
      %p180 = scmp.ne.s32.totalorder %s165, %s179
      %p181 = scmp.eq.s32.totalorder %s29, 0
      %p182 = por %p180, %p181
      %s184 = sadd.s32 %s183, 1
      %p187 = scmp.eq.s32.totalorder %s23, 1
      %p188 = scmp.ne.s32.totalorder %s183, %s185
      %p189 = scmp.eq.s32.totalorder %s23, 0
      %p190 = por %p188, %p189
      %p191 = scmp.ne.s32.totalorder %s183, %s185
      %p192 = scmp.eq.s32.totalorder %s28, 1
      %p193 = por %p191, %p192
      %p194 = scmp.ne.s32.totalorder %s185, %s186
      %p195 = scmp.eq.s32.totalorder %s28, 0
      %p196 = por %p194, %p195
      %p197 = scmp.ne.s32.totalorder %s185, %s186
      %p198 = scmp.eq.s32.totalorder %s29, 1
      %p199 = por %p197, %p198
      %p201 = scmp.ne.s32.totalorder %s186, %s200
      %p202 = scmp.eq.s32.totalorder %s29, 0
      %p203 = por %p201, %p202
      %s204 = ssub.s32 %s23, %s30
      %p205 = scmp.eq.s32.totalorder %s204, 0
      %s207 = sadd.s32 %s206, 1
      %s208 = scalar_select %p205, %s206, %s207
      %p211 = pneg %p205
      %p212 = scmp.eq.s32.totalorder %s23, 1
      %p213 = por %p211, %p212
      %p214 = scmp.ne.s32.totalorder %s206, %s209
      %p215 = scmp.eq.s32.totalorder %s23, 0
      %p216 = por %p214, %p215
      %p217 = scmp.ne.s32.totalorder %s206, %s209
      %p218 = scmp.eq.s32.totalorder %s28, 1
      %p219 = por %p217, %p218
      %p220 = scmp.ne.s32.totalorder %s209, %s210
      %p221 = scmp.eq.s32.totalorder %s28, 0
      %p222 = por %p220, %p221
      %p223 = scmp.ne.s32.totalorder %s209, %s210
      %p224 = scmp.eq.s32.totalorder %s29, 1
      %p225 = por %p223, %p224
      %p227 = scmp.ne.s32.totalorder %s210, %s226
      %p228 = scmp.eq.s32.totalorder %s29, 0
      %p229 = por %p227, %p228
      %p230 = scmp.le.s32.totalorder 1, %s23
      %p231 = scmp.lt.s32.totalorder %s23, 3
      %p232 = pnand %p230, %p231
      %p233 = pneg %p232
      // Predicated region
      $region9: #{tpu_custom_call.1} parent=5 // pred_check
        _
      $region10: #{tpu_custom_call.1} parent=5 // pred_check_branch
        %235 = sbr.rel (%p232) target = $region12
      $region11: #{tpu_custom_call.1} parent=5 // pred_region
        %s236 = ssub.s32 %s23, 1
        // Predicated region
        $region13: #{tpu_custom_call.1} parent=11 // pred_check
          %p237 = pneg %p70
        $region14: #{tpu_custom_call.1} parent=11 // pred_check_branch
          %239 = sbr.rel (%p237) target = $region16
        $region15: #{tpu_custom_call.1} parent=11 // pred_region
          %241 = vsyncadd [#allocation7], 0
          %s242 = sshll.u32 %s1, 4
          %s243 = int_to_ptr.hbm [resolvable:$true] %s242
          %s244 = sshll.u32 [#allocation6], 4
          %s245 = int_to_ptr.vmem [resolvable:$true] %s244
          %250 = dma.hbm_to_vmem [thread:$0]  %s243, 256, %s245, [#allocation7], 128, 128, 8
        $region16: #{tpu_custom_call.1} parent=11 // pred_fallthru
          _
        // Predicated region
        $region17: #{tpu_custom_call.1} parent=11 // pred_check
          %p251 = pneg %p91
        $region18: #{tpu_custom_call.1} parent=11 // pred_check_branch
          %253 = sbr.rel (%p251) target = $region20
        $region19: #{tpu_custom_call.1} parent=11 // pred_region
          %255 = vsyncadd [#allocation7], 0
          %s256 = sshll.u32 %s2, 4
          %s257 = int_to_ptr.hbm [resolvable:$true] %s256
          %s258 = sshll.u32 [#allocation8], 4
          %s259 = int_to_ptr.vmem [resolvable:$true] %s258
          %264 = dma.hbm_to_vmem [thread:$0]  %s257, 256, %s259, [#allocation7], 128, 128, 8
        $region20: #{tpu_custom_call.1} parent=11 // pred_fallthru
          _
        // Predicated region
        $region21: #{tpu_custom_call.1} parent=11 // pred_check
          %p265 = pneg %p112
        $region22: #{tpu_custom_call.1} parent=11 // pred_check_branch
          %267 = sbr.rel (%p265) target = $region24
        $region23: #{tpu_custom_call.1} parent=11 // pred_region
          _
        $region24: #{tpu_custom_call.1} parent=11 // pred_fallthru
          _
        // Predicated region
        $region25: #{tpu_custom_call.1} parent=11 // pred_check
          %p268 = pneg %p133
        $region26: #{tpu_custom_call.1} parent=11 // pred_check_branch
          %270 = sbr.rel (%p268) target = $region28
        $region27: #{tpu_custom_call.1} parent=11 // pred_region
          %272 = vsyncadd [#allocation10], 0
          %s273 = sshll.u32 %s4, 4
          %s274 = int_to_ptr.hbm [resolvable:$true] %s273
          %s275 = sshll.u32 [#allocation9], 4
          %s276 = int_to_ptr.vmem [resolvable:$true] %s275
          %281 = dma.hbm_to_vmem [thread:$0]  %s274, 3072, %s276, [#allocation10], 192, 192, 12
        $region28: #{tpu_custom_call.1} parent=11 // pred_fallthru
          _
        // Predicated region
        $region29: #{tpu_custom_call.1} parent=11 // pred_check
          %p282 = pneg %p154
        $region30: #{tpu_custom_call.1} parent=11 // pred_check_branch
          %284 = sbr.rel (%p282) target = $region32
        $region31: #{tpu_custom_call.1} parent=11 // pred_region
          _
        $region32: #{tpu_custom_call.1} parent=11 // pred_fallthru
          _
        // Predicated region
        $region33: #{tpu_custom_call.1} parent=11 // pred_check
          %p285 = pneg %p175
        $region34: #{tpu_custom_call.1} parent=11 // pred_check_branch
          %287 = sbr.rel (%p285) target = $region36
        $region35: #{tpu_custom_call.1} parent=11 // pred_region
          %289 = vsyncadd [#allocation10], 0
          %s290 = sshll.u32 %s6, 4
          %s291 = int_to_ptr.hbm [resolvable:$true] %s290
          %s292 = sshll.u32 [#allocation11], 4
          %s293 = int_to_ptr.vmem [resolvable:$true] %s292
          %298 = dma.hbm_to_vmem [thread:$0]  %s291, 1024, %s293, [#allocation10], 64, 64, 4
        $region36: #{tpu_custom_call.1} parent=11 // pred_fallthru
          _
        // Predicated region
        $region37: #{tpu_custom_call.1} parent=11 // pred_check
          %p299 = pneg %p196
        $region38: #{tpu_custom_call.1} parent=11 // pred_check_branch
          %301 = sbr.rel (%p299) target = $region40
        $region39: #{tpu_custom_call.1} parent=11 // pred_region
          _
        $region40: #{tpu_custom_call.1} parent=11 // pred_fallthru
          _
      $region12: #{tpu_custom_call.1} parent=5 // pred_fallthru
        _
      %p302 = scmp.lt.s32.totalorder %s23, 2
      // Predicated region
      $region41: #{tpu_custom_call.1} parent=5 // pred_check
        %p303 = pneg %p302
      $region42: #{tpu_custom_call.1} parent=5 // pred_check_branch
        %305 = sbr.rel (%p303) target = $region44
      $region43: #{tpu_custom_call.1} parent=5 // pred_region
        // Predicated region
        $region45: #{tpu_custom_call.1} parent=43 // pred_check
          %p306 = pneg %p43
        $region46: #{tpu_custom_call.1} parent=43 // pred_check_branch
          %308 = sbr.rel (%p306) target = $region48
        $region47: #{tpu_custom_call.1} parent=43 // pred_region
          %s309 = sand.u32 %s33, 1
          %s310 = scalar_lea.sflag [#allocation4], %s309
          %s311 = sand.u32 %s33, 1
          %s312 = smul.addr %s311, 16
          %s313 = scalar_lea.vmem [#allocation3], %s312
          %315 = vsyncadd %s310, 0
          %s316 = smul.addr %s23, 2
          %s317 = smul.addr %s316, 8
          %s318 = scalar_lea.hbm %s0, %s317
          %s319 = sshll.u32 %s318, 4
          %s320 = int_to_ptr.hbm [resolvable:$true] %s319
          %s321 = sshll.u32 %s313, 4
          %s322 = int_to_ptr.vmem [resolvable:$true] %s321
          %327 = dma.hbm_to_vmem [thread:$0]  %s320, 256, %s322, %s310, 128, 128, 8
        $region48: #{tpu_custom_call.1} parent=43 // pred_fallthru
          _
      $region44: #{tpu_custom_call.1} parent=5 // pred_fallthru
        _
      %p328 = scmp.le.s32.totalorder 1, %s23
      %p329 = scmp.lt.s32.totalorder %s23, 3
      %p330 = pnand %p328, %p329
      %p331 = pneg %p330
      // Predicated region
      $region49: #{tpu_custom_call.1} parent=5 // pred_check
        _
      $region50: #{tpu_custom_call.1} parent=5 // pred_check_branch
        %333 = sbr.rel (%p330) target = $region52
      $region51: #{tpu_custom_call.1} parent=5 // pred_region
        %s334 = ssub.s32 %s23, 1
        %s335 = sand.u32 %s36, 1
        %s336 = scalar_lea.sflag [#allocation4], %s335
        %s337 = sand.u32 %s36, 1
        %s338 = smul.addr %s337, 16
        %s339 = scalar_lea.vmem [#allocation3], %s338
        // Predicated region
        $region53: #{tpu_custom_call.1} parent=51 // pred_check
          %p340 = pneg %p49
        $region54: #{tpu_custom_call.1} parent=51 // pred_check_branch
          %342 = sbr.rel (%p340) target = $region56
        $region55: #{tpu_custom_call.1} parent=51 // pred_region
          %344 = dma.done %s336, 256
        $region56: #{tpu_custom_call.1} parent=51 // pred_fallthru
          _
        // Predicated region
        $region57: #{tpu_custom_call.1} parent=51 // pred_check
          %p345 = pneg %p70
        $region58: #{tpu_custom_call.1} parent=51 // pred_check_branch
          %347 = sbr.rel (%p345) target = $region60
        $region59: #{tpu_custom_call.1} parent=51 // pred_region
          %349 = dma.done [#allocation7], 256
        $region60: #{tpu_custom_call.1} parent=51 // pred_fallthru
          _
        // Predicated region
        $region61: #{tpu_custom_call.1} parent=51 // pred_check
          %p350 = pneg %p91
        $region62: #{tpu_custom_call.1} parent=51 // pred_check_branch
          %352 = sbr.rel (%p350) target = $region64
        $region63: #{tpu_custom_call.1} parent=51 // pred_region
          %354 = dma.done [#allocation7], 256
        $region64: #{tpu_custom_call.1} parent=51 // pred_fallthru
          _
        // Predicated region
        $region65: #{tpu_custom_call.1} parent=51 // pred_check
          %p355 = pneg %p133
        $region66: #{tpu_custom_call.1} parent=51 // pred_check_branch
          %357 = sbr.rel (%p355) target = $region68
        $region67: #{tpu_custom_call.1} parent=51 // pred_region
          %359 = dma.done [#allocation10], 3072
        $region68: #{tpu_custom_call.1} parent=51 // pred_fallthru
          _
        // Predicated region
        $region69: #{tpu_custom_call.1} parent=51 // pred_check
          %p360 = pneg %p175
        $region70: #{tpu_custom_call.1} parent=51 // pred_check_branch
          %362 = sbr.rel (%p360) target = $region72
        $region71: #{tpu_custom_call.1} parent=51 // pred_region
          %364 = dma.done [#allocation10], 1024
        $region72: #{tpu_custom_call.1} parent=51 // pred_fallthru
          _
        %s365 = sand.u32 %s36, 1
        %s366 = scalar_lea.sflag [#allocation4], %s365
        %s367 = sand.u32 %s36, 1
        %s368 = smul.addr %s367, 16
        %s369 = scalar_lea.vmem [#allocation3], %s368
        %p370 = pneg %p49
        %p371 = pneg %p46
        %p372 = pneg %p70
        %p373 = pneg %p67
        %p374 = pneg %p91
        %p375 = pneg %p88
        %p376 = pneg %p112
        %p377 = pneg %p109
        %p378 = pneg %p133
        %p379 = pneg %p130
        %p380 = pneg %p154
        %p381 = pneg %p151
        %p382 = pneg %p175
        %p383 = pneg %p172
        %p384 = pneg %p196
        %p385 = pneg %p193
        %p386 = pneg %p222
        %p387 = pneg %p219
        %s388 = sand.u32 %s209, 1
        %s389 = scalar_lea.sflag [#allocation5], %s388
        %s390 = sand.u32 %s209, 1
        %s391 = smul.addr %s390, 16
        %s392 = scalar_lea.vmem [#allocation12], %s391
        %s394 = sld [smem:[#allocation2]]
        %v395 = vld [vmem:[#allocation6] sm:$0xff]
        %v396 = vld [vmem:[#allocation6 + $0x8] sm:$0xff]
        %v397 = vstv %s394
        %v398 = vmul.f32 %v397, %v395
        %v399 = vmul.f32 %v397, %v396
        %s400 = ssub.f32 1.0, %s394
        %v401 = vld [vmem:[#allocation8] sm:$0xff]
        %v402 = vld [vmem:[#allocation8 + $0x8] sm:$0xff]
        %v403 = vstv %s400
        %v404 = vmul.f32 %v403, %v401
        %v405 = vmul.f32 %v403, %v402
        %v406 = vadd.f32 %v398, %v404
        %v407 = vadd.f32 %v399, %v405
        %v408 = vld [vmem:[%s339] sm:$0xff]
        %v409 = vld [vmem:[%s339 + $0x8] sm:$0xff]
        %v410 = vadd.f32 %v408, %v406
        %v411 = vadd.f32 %v409, %v407
        %v412 = vpack.c.bf16 %v411, %v410
        %v413 = vld [vmem:[#allocation9] sm:$0xff]
        %v414 = vld [vmem:[#allocation9 + $0x8] sm:$0xf]
        %v415 = vld [vmem:[#allocation9 + $0xc] sm:$0xff]
        %v416 = vld [vmem:[#allocation9 + $0x14] sm:$0xf]
        %v417 = vld [vmem:[#allocation9 + $0x18] sm:$0xff]
        %v418 = vld [vmem:[#allocation9 + $0x20] sm:$0xf]
        %v419 = vld [vmem:[#allocation9 + $0x24] sm:$0xff]
        %v420 = vld [vmem:[#allocation9 + $0x2c] sm:$0xf]
        %v421 = vld [vmem:[#allocation9 + $0x30] sm:$0xff]
        %v422 = vld [vmem:[#allocation9 + $0x38] sm:$0xf]
        %v423 = vld [vmem:[#allocation9 + $0x3c] sm:$0xff]
        %v424 = vld [vmem:[#allocation9 + $0x44] sm:$0xf]
        %v425 = vld [vmem:[#allocation9 + $0x48] sm:$0xff]
        %v426 = vld [vmem:[#allocation9 + $0x50] sm:$0xf]
        %v427 = vld [vmem:[#allocation9 + $0x54] sm:$0xff]
        %v428 = vld [vmem:[#allocation9 + $0x5c] sm:$0xf]
        %v429 = vld [vmem:[#allocation9 + $0x60] sm:$0xff]
        %v430 = vld [vmem:[#allocation9 + $0x68] sm:$0xf]
        %v431 = vld [vmem:[#allocation9 + $0x6c] sm:$0xff]
        %v432 = vld [vmem:[#allocation9 + $0x74] sm:$0xf]
        %v433 = vld [vmem:[#allocation9 + $0x78] sm:$0xff]
        %v434 = vld [vmem:[#allocation9 + $0x80] sm:$0xf]
        %v435 = vld [vmem:[#allocation9 + $0x84] sm:$0xff]
        %v436 = vld [vmem:[#allocation9 + $0x8c] sm:$0xf]
        %v437 = vld [vmem:[#allocation9 + $0x90] sm:$0xff]
        %v438 = vld [vmem:[#allocation9 + $0x98] sm:$0xf]
        %v439 = vld [vmem:[#allocation9 + $0x9c] sm:$0xff]
        %v440 = vld [vmem:[#allocation9 + $0xa4] sm:$0xf]
        %v441 = vld [vmem:[#allocation9 + $0xa8] sm:$0xff]
        %v442 = vld [vmem:[#allocation9 + $0xb0] sm:$0xf]
        %v443 = vld [vmem:[#allocation9 + $0xb4] sm:$0xff]
        %v444 = vld [vmem:[#allocation9 + $0xbc] sm:$0xf]
        %v445 = vld [vmem:[%s5] sm:$0x7]
        %v447 = vperm.slane %v445, 0
        %v448 = vperm.slane %v445, 1
        %v449 = vperm.slane %v445, 2
        %v485 = vunpack.c.l.b16 %v413
        %v486 = vunpack.c.h.b16 %v413
        %v487 = vunpack.c.l.b16 %v414
        %v488 = vunpack.c.l.b16 %v415
        %v489 = vunpack.c.h.b16 %v415
        %v490 = vunpack.c.l.b16 %v416
        %v491 = vunpack.c.l.b16 %v417
        %v492 = vunpack.c.h.b16 %v417
        %v493 = vunpack.c.l.b16 %v418
        %v494 = vunpack.c.l.b16 %v419
        %v495 = vunpack.c.h.b16 %v419
        %v496 = vunpack.c.l.b16 %v420
        %v497 = vunpack.c.l.b16 %v421
        %v498 = vunpack.c.h.b16 %v421
        %v499 = vunpack.c.l.b16 %v422
        %v500 = vunpack.c.l.b16 %v423
        %v501 = vunpack.c.h.b16 %v423
        %v502 = vunpack.c.l.b16 %v424
        %v503 = vunpack.c.l.b16 %v425
        %v504 = vunpack.c.h.b16 %v425
        %v505 = vunpack.c.l.b16 %v426
        %v506 = vunpack.c.l.b16 %v427
        %v507 = vunpack.c.h.b16 %v427
        %v508 = vunpack.c.l.b16 %v428
        %v509 = vunpack.c.l.b16 %v429
        %v510 = vunpack.c.h.b16 %v429
        %v511 = vunpack.c.l.b16 %v430
        %v512 = vunpack.c.l.b16 %v431
        %v513 = vunpack.c.h.b16 %v431
        %v514 = vunpack.c.l.b16 %v432
        %v515 = vunpack.c.l.b16 %v433
        %v516 = vunpack.c.h.b16 %v433
        %v517 = vunpack.c.l.b16 %v434
        %v518 = vunpack.c.l.b16 %v435
        %v519 = vunpack.c.h.b16 %v435
        %v520 = vunpack.c.l.b16 %v436
        %v521 = vunpack.c.l.b16 %v437
        %v522 = vunpack.c.h.b16 %v437
        %v523 = vunpack.c.l.b16 %v438
        %v524 = vunpack.c.l.b16 %v439
        %v525 = vunpack.c.h.b16 %v439
        %v526 = vunpack.c.l.b16 %v440
        %v527 = vunpack.c.l.b16 %v441
        %v528 = vunpack.c.h.b16 %v441
        %v529 = vunpack.c.l.b16 %v442
        %v530 = vunpack.c.l.b16 %v443
        %v531 = vunpack.c.h.b16 %v443
        %v532 = vunpack.c.l.b16 %v444
        %v533 = vpack.c.b16 %v488, %v485
        %v534 = vpack.c.b16 %v489, %v486
        %v535 = vpack.c.b16 %v490, %v487
        %v536 = vpack.c.b16 %v494, %v491
        %v537 = vpack.c.b16 %v495, %v492
        %v538 = vpack.c.b16 %v496, %v493
        %v539 = vpack.c.b16 %v500, %v497
        %v540 = vpack.c.b16 %v501, %v498
        %v541 = vpack.c.b16 %v502, %v499
        %v542 = vpack.c.b16 %v506, %v503
        %v543 = vpack.c.b16 %v507, %v504
        %v544 = vpack.c.b16 %v508, %v505
        %v545 = vpack.c.b16 %v512, %v509
        %v546 = vpack.c.b16 %v513, %v510
        %v547 = vpack.c.b16 %v514, %v511
        %v548 = vpack.c.b16 %v518, %v515
        %v549 = vpack.c.b16 %v519, %v516
        %v550 = vpack.c.b16 %v520, %v517
        %v551 = vpack.c.b16 %v524, %v521
        %v552 = vpack.c.b16 %v525, %v522
        %v553 = vpack.c.b16 %v526, %v523
        %v554 = vpack.c.b16 %v530, %v527
        %v555 = vpack.c.b16 %v531, %v528
        %v556 = vpack.c.b16 %v532, %v529
        %581 = vmatpush.bf16.msra.mxu0 %v554
        %582 = vmatpush.bf16.msra.mxu0 %v551
        %583 = vmatpush.bf16.msra.mxu0 %v548
        %584 = vmatpush.bf16.msra.mxu0 %v545
        %585 = vmatpush.bf16.msra.mxu0 %v542
        %586 = vmatpush.bf16.msra.mxu0 %v539
        %587 = vmatpush.bf16.msra.mxu0 %v536
        %588 = vmatpush.bf16.msra.mxu0 %v533
        %589 = vmatmul.bf16.gmra.mxu0 %v412
        %v590 = vpop.f32.mrf.mxu0
        %v591 = vadd.f32 %v447, %v590
        %v592 = vpop.f32.mrf.mxu0
        %v593 = vadd.f32 %v447, %v592
        %594 = vdwg.mxu0
        %595 = vmatpush.bf16.msra.mxu0 %v555
        %596 = vmatpush.bf16.msra.mxu0 %v552
        %597 = vmatpush.bf16.msra.mxu0 %v549
        %598 = vmatpush.bf16.msra.mxu0 %v546
        %599 = vmatpush.bf16.msra.mxu0 %v543
        %600 = vmatpush.bf16.msra.mxu0 %v540
        %601 = vmatpush.bf16.msra.mxu0 %v537
        %602 = vmatpush.bf16.msra.mxu0 %v534
        %603 = vmatmul.bf16.gmra.mxu0 %v412
        %v604 = vpop.f32.mrf.mxu0
        %v605 = vadd.f32 %v448, %v604
        %v606 = vpop.f32.mrf.mxu0
        %v607 = vadd.f32 %v448, %v606
        %608 = vdwg.mxu0
        %609 = vmatpush.bf16.msra.mxu0 %v556
        %610 = vmatpush.bf16.msra.mxu0 %v553
        %611 = vmatpush.bf16.msra.mxu0 %v550
        %612 = vmatpush.bf16.msra.mxu0 %v547
        %613 = vmatpush.bf16.msra.mxu0 %v544
        %614 = vmatpush.bf16.msra.mxu0 %v541
        %615 = vmatpush.bf16.msra.mxu0 %v538
        %616 = vmatpush.bf16.msra.mxu0 %v535
        %617 = vmatmul.bf16.gmra.mxu0 %v412
        %v618 = vpop.f32.mrf.mxu0
        %v619 = vadd.f32 %v449, %v618
        %v620 = vpop.f32.mrf.mxu0
        %v621 = vadd.f32 %v449, %v620
        %622 = vdwg.mxu0
        %v623 = vmul.f32 %v591, 0.088388346
        %v624 = vmul.f32 %v593, 0.088388346
        %v625 = vpack.c.bf16 %v624, %v623
        %v626 = vpack.c.bf16 %v607, %v605
        %v627 = vpack.c.bf16 %v621, %v619
        %vm628 = vcmask 261120
        %v630 = vsel %vm628, %v625, 0
        %v633 = vsel %vm628, %v626, 0
        %635 = vmatpush.bf16.xpose.msra.mxu0 0
        %636 = vmatpush.bf16.xpose.msra.mxu0 0
        %637 = vmatpush.bf16.xpose.msra.mxu0 0
        %638 = vmatpush.bf16.xpose.msra.mxu0 0
        %639 = vmatpush.bf16.xpose.msra.mxu0 0
        %640 = vmatpush.bf16.xpose.msra.mxu0 0
        %641 = vmatpush.bf16.xpose.msra.mxu0 0
        %642 = vmatpush.bf16.xpose.msra.mxu0 %v633
        %643 = vmatmul.bf16.gmra.mxu0 %v630
        %v644 = vpop.f32.mrf.mxu0
        %v645 = vadd.f32 0.0, %v644
        %v646 = vpop.f32.mrf.mxu0
        %v647 = vadd.f32 0.0, %v646
        %648 = vdwg.mxu0
        %vm649 = vcmask 130048
        %v650 = vsel %vm649, %v645, -inf
        %651 = vmax.xlane.f32.xlu0 %v650
        %v652 = vpop.xlane.xlu0 %651
        %v653 = vsel %vm649, %v647, -inf
        %654 = vmax.xlane.f32.xlu0 %v653
        %v655 = vpop.xlane.xlu0 %654
        %v656 = vsub.f32 %v645, %v652
        %v657 = vsub.f32 %v647, %v655
        %v658 = vmul.f32 %v656, 1.442695
        %v659 = vpow.pop %v658
        %v660 = vmul.f32 %v657, 1.442695
        %v661 = vpow.pop %v660
        %v662 = vsel %vm649, %v659, 0.0
        %663 = vadd.xlane.f32.xlu0 %v662
        %v664 = vpop.xlane.xlu0 %663
        %v665 = vsel %vm649, %v661, 0.0
        %666 = vadd.xlane.f32.xlu0 %v665
        %v667 = vpop.xlane.xlu0 %666
        %v668 = vrcp.pop %v664
        %v669 = vrcp.pop %v667
        %v670 = vpack.c.bf16 %v661, %v659
        %v672 = vsel %vm649, %v670, 0
        %674 = vmatpush.bf16.msra.mxu0 0
        %675 = vmatpush.bf16.msra.mxu0 0
        %676 = vmatpush.bf16.msra.mxu0 0
        %677 = vmatpush.bf16.msra.mxu0 0
        %678 = vmatpush.bf16.msra.mxu0 0
        %679 = vmatpush.bf16.msra.mxu0 0
        %680 = vmatpush.bf16.msra.mxu0 0
        %681 = vmatpush.bf16.msra.mxu0 %v627
        %682 = vmatmul.bf16.gmra.mxu0 %v672
        %v683 = vpop.f32.mrf.mxu0
        %v684 = vadd.f32 0.0, %v683
        %v685 = vpop.f32.mrf.mxu0
        %v686 = vadd.f32 0.0, %v685
        %687 = vdwg.mxu0
        %v688 = vmul.f32 %v684, %v668
        %v689 = vmul.f32 %v686, %v669
        %v690 = vpack.c.bf16 %v688, %v688
        %v691 = vpack.c.bf16 %v689, %v689
        %693 = vrot.lane.b32.xlu0 %v625, 96
        %v694 = vpop.permute.xlu0 %693
        %696 = vrot.lane.b32.xlu0 %v626, 96
        %v697 = vpop.permute.xlu0 %696
        %v699 = vsel %vm628, %v694, 0
        %v702 = vsel %vm628, %v697, 0
        %704 = vmatpush.bf16.xpose.msra.mxu0 0
        %705 = vmatpush.bf16.xpose.msra.mxu0 0
        %706 = vmatpush.bf16.xpose.msra.mxu0 0
        %707 = vmatpush.bf16.xpose.msra.mxu0 0
        %708 = vmatpush.bf16.xpose.msra.mxu0 0
        %709 = vmatpush.bf16.xpose.msra.mxu0 0
        %710 = vmatpush.bf16.xpose.msra.mxu0 0
        %711 = vmatpush.bf16.xpose.msra.mxu0 %v702
        %712 = vmatmul.bf16.gmra.mxu0 %v699
        %v713 = vpop.f32.mrf.mxu0
        %v714 = vadd.f32 0.0, %v713
        %v715 = vpop.f32.mrf.mxu0
        %v716 = vadd.f32 0.0, %v715
        %717 = vdwg.mxu0
        %v718 = vsel %vm649, %v714, -inf
        %719 = vmax.xlane.f32.xlu0 %v718
        %v720 = vpop.xlane.xlu0 %719
        %v721 = vsel %vm649, %v716, -inf
        %722 = vmax.xlane.f32.xlu0 %v721
        %v723 = vpop.xlane.xlu0 %722
        %v724 = vsub.f32 %v714, %v720
        %v725 = vsub.f32 %v716, %v723
        %v726 = vmul.f32 %v724, 1.442695
        %v727 = vpow.pop %v726
        %v728 = vmul.f32 %v725, 1.442695
        %v729 = vpow.pop %v728
        %v730 = vsel %vm649, %v727, 0.0
        %731 = vadd.xlane.f32.xlu0 %v730
        %v732 = vpop.xlane.xlu0 %731
        %v733 = vsel %vm649, %v729, 0.0
        %734 = vadd.xlane.f32.xlu0 %v733
        %v735 = vpop.xlane.xlu0 %734
        %v736 = vrcp.pop %v732
        %v737 = vrcp.pop %v735
        %v738 = vpack.c.bf16 %v729, %v727
        %740 = vrot.lane.b32.xlu0 %v627, 96
        %v741 = vpop.permute.xlu0 %740
        %v744 = vsel %vm649, %v738, 0
        %746 = vmatpush.bf16.msra.mxu0 0
        %747 = vmatpush.bf16.msra.mxu0 0
        %748 = vmatpush.bf16.msra.mxu0 0
        %749 = vmatpush.bf16.msra.mxu0 0
        %750 = vmatpush.bf16.msra.mxu0 0
        %751 = vmatpush.bf16.msra.mxu0 0
        %752 = vmatpush.bf16.msra.mxu0 0
        %753 = vmatpush.bf16.msra.mxu0 %v741
        %754 = vmatmul.bf16.gmra.mxu0 %v744
        %v755 = vpop.f32.mrf.mxu0
        %v756 = vadd.f32 0.0, %v755
        %v757 = vpop.f32.mrf.mxu0
        %v758 = vadd.f32 0.0, %v757
        %759 = vdwg.mxu0
        %v760 = vmul.f32 %v756, %v736
        %v761 = vmul.f32 %v758, %v737
        %v762 = vpack.c.bf16 %v760, %v760
        %v763 = vpack.c.bf16 %v761, %v761
        %764 = vrot.lane.b32.xlu0 %v625, 64
        %v765 = vpop.permute.xlu0 %764
        %766 = vrot.lane.b32.xlu0 %v626, 64
        %v767 = vpop.permute.xlu0 %766
        %v769 = vsel %vm628, %v765, 0
        %v772 = vsel %vm628, %v767, 0
        %774 = vmatpush.bf16.xpose.msra.mxu0 0
        %775 = vmatpush.bf16.xpose.msra.mxu0 0
        %776 = vmatpush.bf16.xpose.msra.mxu0 0
        %777 = vmatpush.bf16.xpose.msra.mxu0 0
        %778 = vmatpush.bf16.xpose.msra.mxu0 0
        %779 = vmatpush.bf16.xpose.msra.mxu0 0
        %780 = vmatpush.bf16.xpose.msra.mxu0 0
        %781 = vmatpush.bf16.xpose.msra.mxu0 %v772
        %782 = vmatmul.bf16.gmra.mxu0 %v769
        %v783 = vpop.f32.mrf.mxu0
        %v784 = vadd.f32 0.0, %v783
        %v785 = vpop.f32.mrf.mxu0
        %v786 = vadd.f32 0.0, %v785
        %787 = vdwg.mxu0
        %v788 = vsel %vm649, %v784, -inf
        %789 = vmax.xlane.f32.xlu0 %v788
        %v790 = vpop.xlane.xlu0 %789
        %v791 = vsel %vm649, %v786, -inf
        %792 = vmax.xlane.f32.xlu0 %v791
        %v793 = vpop.xlane.xlu0 %792
        %v794 = vsub.f32 %v784, %v790
        %v795 = vsub.f32 %v786, %v793
        %v796 = vmul.f32 %v794, 1.442695
        %v797 = vpow.pop %v796
        %v798 = vmul.f32 %v795, 1.442695
        %v799 = vpow.pop %v798
        %v800 = vsel %vm649, %v797, 0.0
        %801 = vadd.xlane.f32.xlu0 %v800
        %v802 = vpop.xlane.xlu0 %801
        %v803 = vsel %vm649, %v799, 0.0
        %804 = vadd.xlane.f32.xlu0 %v803
        %v805 = vpop.xlane.xlu0 %804
        %v806 = vrcp.pop %v802
        %v807 = vrcp.pop %v805
        %v808 = vpack.c.bf16 %v799, %v797
        %809 = vrot.lane.b32.xlu0 %v627, 64
        %v810 = vpop.permute.xlu0 %809
        %v813 = vsel %vm649, %v808, 0
        %815 = vmatpush.bf16.msra.mxu0 0
        %816 = vmatpush.bf16.msra.mxu0 0
        %817 = vmatpush.bf16.msra.mxu0 0
        %818 = vmatpush.bf16.msra.mxu0 0
        %819 = vmatpush.bf16.msra.mxu0 0
        %820 = vmatpush.bf16.msra.mxu0 0
        %821 = vmatpush.bf16.msra.mxu0 0
        %822 = vmatpush.bf16.msra.mxu0 %v810
        %823 = vmatmul.bf16.gmra.mxu0 %v813
        %v824 = vpop.f32.mrf.mxu0
        %v825 = vadd.f32 0.0, %v824
        %v826 = vpop.f32.mrf.mxu0
        %v827 = vadd.f32 0.0, %v826
        %828 = vdwg.mxu0
        %v829 = vmul.f32 %v825, %v806
        %v830 = vmul.f32 %v827, %v807
        %v831 = vpack.c.bf16 %v829, %v829
        %v832 = vpack.c.bf16 %v830, %v830
        %833 = vrot.lane.b32.xlu0 %v625, 32
        %v834 = vpop.permute.xlu0 %833
        %835 = vrot.lane.b32.xlu0 %v626, 32
        %v836 = vpop.permute.xlu0 %835
        %v838 = vsel %vm628, %v834, 0
        %v841 = vsel %vm628, %v836, 0
        %843 = vmatpush.bf16.xpose.msra.mxu0 0
        %844 = vmatpush.bf16.xpose.msra.mxu0 0
        %845 = vmatpush.bf16.xpose.msra.mxu0 0
        %846 = vmatpush.bf16.xpose.msra.mxu0 0
        %847 = vmatpush.bf16.xpose.msra.mxu0 0
        %848 = vmatpush.bf16.xpose.msra.mxu0 0
        %849 = vmatpush.bf16.xpose.msra.mxu0 0
        %850 = vmatpush.bf16.xpose.msra.mxu0 %v841
        %851 = vmatmul.bf16.gmra.mxu0 %v838
        %v852 = vpop.f32.mrf.mxu0
        %v853 = vadd.f32 0.0, %v852
        %v854 = vpop.f32.mrf.mxu0
        %v855 = vadd.f32 0.0, %v854
        %856 = vdwg.mxu0
        %v857 = vsel %vm649, %v853, -inf
        %858 = vmax.xlane.f32.xlu0 %v857
        %v859 = vpop.xlane.xlu0 %858
        %v860 = vsel %vm649, %v855, -inf
        %861 = vmax.xlane.f32.xlu0 %v860
        %v862 = vpop.xlane.xlu0 %861
        %v863 = vsub.f32 %v853, %v859
        %v864 = vsub.f32 %v855, %v862
        %v865 = vmul.f32 %v863, 1.442695
        %v866 = vpow.pop %v865
        %v867 = vmul.f32 %v864, 1.442695
        %v868 = vpow.pop %v867
        %v869 = vsel %vm649, %v866, 0.0
        %870 = vadd.xlane.f32.xlu0 %v869
        %v871 = vpop.xlane.xlu0 %870
        %v872 = vsel %vm649, %v868, 0.0
        %873 = vadd.xlane.f32.xlu0 %v872
        %v874 = vpop.xlane.xlu0 %873
        %v875 = vrcp.pop %v871
        %v876 = vrcp.pop %v874
        %v877 = vpack.c.bf16 %v868, %v866
        %878 = vrot.lane.b32.xlu0 %v627, 32
        %v879 = vpop.permute.xlu0 %878
        %v882 = vsel %vm649, %v877, 0
        %884 = vmatpush.bf16.msra.mxu0 0
        %885 = vmatpush.bf16.msra.mxu0 0
        %886 = vmatpush.bf16.msra.mxu0 0
        %887 = vmatpush.bf16.msra.mxu0 0
        %888 = vmatpush.bf16.msra.mxu0 0
        %889 = vmatpush.bf16.msra.mxu0 0
        %890 = vmatpush.bf16.msra.mxu0 0
        %891 = vmatpush.bf16.msra.mxu0 %v879
        %892 = vmatmul.bf16.gmra.mxu0 %v882
        %v893 = vpop.f32.mrf.mxu0
        %v894 = vadd.f32 0.0, %v893
        %v895 = vpop.f32.mrf.mxu0
        %v896 = vadd.f32 0.0, %v895
        %897 = vdwg.mxu0
        %v898 = vmul.f32 %v894, %v875
        %v899 = vmul.f32 %v896, %v876
        %v900 = vpack.c.bf16 %v898, %v898
        %v901 = vpack.c.bf16 %v899, %v899
        %v904 = vunpack.c.l.b16 %v690
        %v905 = vunpack.c.l.b16 %v691
        %v906 = vpack.c.b16 %v905, %v904
        %v909 = vunpack.c.l.b16 %v762
        %v910 = vunpack.c.l.b16 %v763
        %v911 = vpack.c.b16 %v910, %v909
        %912 = vrot.lane.b32.xlu0 %v911, 32
        %v913 = vpop.permute.xlu0 %912
        %v916 = vunpack.c.l.b16 %v831
        %v917 = vunpack.c.l.b16 %v832
        %v918 = vpack.c.b16 %v917, %v916
        %919 = vrot.lane.b32.xlu0 %v918, 64
        %v920 = vpop.permute.xlu0 %919
        %v923 = vunpack.c.l.b16 %v900
        %v924 = vunpack.c.l.b16 %v901
        %v925 = vpack.c.b16 %v924, %v923
        %926 = vrot.lane.b32.xlu0 %v925, 96
        %v927 = vpop.permute.xlu0 %926
        %v930 = vsel %vm628, %v906, %v913
        %vm931 = vcmask 523264
        %v933 = vsel %vm931, %v930, %v920
        %vm934 = vcmask 785408
        %v936 = vsel %vm934, %v933, %v927
        %v938 = vld [vmem:[#allocation11] sm:$0xf]
        %v939 = vld [vmem:[#allocation11 + $0x4] sm:$0xf]
        %v940 = vld [vmem:[#allocation11 + $0x8] sm:$0xf]
        %v941 = vld [vmem:[#allocation11 + $0xc] sm:$0xf]
        %v942 = vld [vmem:[#allocation11 + $0x10] sm:$0xf]
        %v943 = vld [vmem:[#allocation11 + $0x14] sm:$0xf]
        %v944 = vld [vmem:[#allocation11 + $0x18] sm:$0xf]
        %v945 = vld [vmem:[#allocation11 + $0x1c] sm:$0xf]
        %v946 = vld [vmem:[#allocation11 + $0x20] sm:$0xf]
        %v947 = vld [vmem:[#allocation11 + $0x24] sm:$0xf]
        %v948 = vld [vmem:[#allocation11 + $0x28] sm:$0xf]
        %v949 = vld [vmem:[#allocation11 + $0x2c] sm:$0xf]
        %v950 = vld [vmem:[#allocation11 + $0x30] sm:$0xf]
        %v951 = vld [vmem:[#allocation11 + $0x34] sm:$0xf]
        %v952 = vld [vmem:[#allocation11 + $0x38] sm:$0xf]
        %v953 = vld [vmem:[#allocation11 + $0x3c] sm:$0xf]
        %v954 = vld [vmem:[%s7] sm:$0x1]
        %v956 = vperm.slane %v954, 0
        %v974 = vunpack.c.l.b16 %v938
        %v975 = vunpack.c.l.b16 %v939
        %v976 = vunpack.c.l.b16 %v940
        %v977 = vunpack.c.l.b16 %v941
        %v978 = vunpack.c.l.b16 %v942
        %v979 = vunpack.c.l.b16 %v943
        %v980 = vunpack.c.l.b16 %v944
        %v981 = vunpack.c.l.b16 %v945
        %v982 = vunpack.c.l.b16 %v946
        %v983 = vunpack.c.l.b16 %v947
        %v984 = vunpack.c.l.b16 %v948
        %v985 = vunpack.c.l.b16 %v949
        %v986 = vunpack.c.l.b16 %v950
        %v987 = vunpack.c.l.b16 %v951
        %v988 = vunpack.c.l.b16 %v952
        %v989 = vunpack.c.l.b16 %v953
        %v990 = vpack.c.b16 %v975, %v974
        %v991 = vpack.c.b16 %v977, %v976
        %v992 = vpack.c.b16 %v979, %v978
        %v993 = vpack.c.b16 %v981, %v980
        %v994 = vpack.c.b16 %v983, %v982
        %v995 = vpack.c.b16 %v985, %v984
        %v996 = vpack.c.b16 %v987, %v986
        %v997 = vpack.c.b16 %v989, %v988
        %1006 = vmatpush.bf16.msra.mxu0 %v997
        %1007 = vmatpush.bf16.msra.mxu0 %v996
        %1008 = vmatpush.bf16.msra.mxu0 %v995
        %1009 = vmatpush.bf16.msra.mxu0 %v994
        %1010 = vmatpush.bf16.msra.mxu0 %v993
        %1011 = vmatpush.bf16.msra.mxu0 %v992
        %1012 = vmatpush.bf16.msra.mxu0 %v991
        %1013 = vmatpush.bf16.msra.mxu0 %v990
        %1014 = vmatmul.bf16.gmra.mxu0 %v936
        %v1015 = vpop.f32.mrf.mxu0
        %v1016 = vadd.f32 %v956, %v1015
        %v1017 = vpop.f32.mrf.mxu0
        %v1018 = vadd.f32 %v956, %v1017
        %1019 = vdwg.mxu0
        %1020 = vst [vmem:[%s392] sm:$0xff] %v1016
        %1021 = vst [vmem:[%s392 + $0x8] sm:$0xff] %v1018
        %s1022 = sand.u32 %s209, 1
        %s1023 = scalar_lea.sflag [#allocation5], %s1022
        %s1024 = sand.u32 %s209, 1
        %s1025 = smul.addr %s1024, 16
        %s1026 = scalar_lea.vmem [#allocation12], %s1025
        // Predicated region
        $region73: #{tpu_custom_call.1} parent=51 // pred_check
          %p1027 = pneg %p219
        $region74: #{tpu_custom_call.1} parent=51 // pred_check_branch
          %1029 = sbr.rel (%p1027) target = $region76
        $region75: #{tpu_custom_call.1} parent=51 // pred_region
          %1031 = vsyncadd %s1023, 0
          %s1032 = smul.addr %s28, 2
          %s1033 = smul.addr %s1032, 8
          %s1034 = scalar_lea.hbm %s8, %s1033
          %s1035 = sshll.u32 %s1026, 4
          %s1036 = int_to_ptr.vmem [resolvable:$true] %s1035
          %s1037 = sshll.u32 %s1034, 4
          %s1038 = int_to_ptr.hbm [resolvable:$true] %s1037
          %1043 = dma.vmem_to_hbm [thread:$0]  %s1036, 256, %s1038, %s1023, 128, 128, 8
        $region76: #{tpu_custom_call.1} parent=51 // pred_fallthru
          _
      $region52: #{tpu_custom_call.1} parent=5 // pred_fallthru
        _
      %p1044 = scmp.le.s32.totalorder 2, %s23
      // Predicated region
      $region77: #{tpu_custom_call.1} parent=5 // pred_check
        %p1045 = pneg %p1044
      $region78: #{tpu_custom_call.1} parent=5 // pred_check_branch
        %1047 = sbr.rel (%p1045) target = $region80
      $region79: #{tpu_custom_call.1} parent=5 // pred_region
        %s1048 = ssub.s32 %s23, 2
        // Predicated region
        $region81: #{tpu_custom_call.1} parent=79 // pred_check
          %p1049 = pneg %p225
        $region82: #{tpu_custom_call.1} parent=79 // pred_check_branch
          %1051 = sbr.rel (%p1049) target = $region84
        $region83: #{tpu_custom_call.1} parent=79 // pred_region
          %s1052 = sand.u32 %s210, 1
          %s1053 = scalar_lea.sflag [#allocation5], %s1052
          %s1054 = sand.u32 %s210, 1
          %s1055 = smul.addr %s1054, 16
          %s1056 = scalar_lea.vmem [#allocation12], %s1055
          %1058 = dma.done %s1053, 256
        $region84: #{tpu_custom_call.1} parent=79 // pred_fallthru
          _
      $region80: #{tpu_custom_call.1} parent=5 // pred_fallthru
        _
    $region6: #{tpu_custom_call.1} parent=1 // loop_footer
      %s27 = sadd.s32 1, %s23
    $region7: #{tpu_custom_call.1} parent=1 // loop_footer_branch
      %22 = sbr.rel target = $region3
    $region8: #{tpu_custom_call.1} parent=1 // loop_exit
      _
    %1059 = vsyncpa [#allocation4], 1
    %s1060 = scalar_lea.sflag [#allocation4], 1
    %1061 = vsyncpa %s1060, 1
    %1062 = vsyncpa [#allocation7], 1
    %1063 = vsyncpa [#allocation10], 1
    %1064 = vsyncpa [#allocation5], 1
    %s1065 = scalar_lea.sflag [#allocation5], 1
    %1066 = vsyncpa %s1065, 1

</llo_original>
